<compile_context>
chip_gen: v7x
topology: tpu7x:2x2x1
jax: 0.10.0
libtpu: 0.0.40
codegen_flags: <defaults>
</compile_context>

<pallas_src>
import functools

import jax
import jax.numpy as jnp
from jax.experimental import pallas as pl
from jax.experimental.pallas import tpu as pltpu


def _channel_attention_kernel(x_ref, w1_ref, w2_ref, o_ref, sum_ref, max_ref,
                              *, hw, block_hw):
    """Grid = (N, num_hw_tiles).  Blocks:
         x_ref : (1, C, block_hw)   w1_ref: (Cr, C)   w2_ref: (C, Cr)
         o_ref : (1, C, 1)          scratch: sum/max accumulators (C, 1) f32
    """
    k = pl.program_id(1)
    nk = pl.num_programs(1)

    @pl.when(k == 0)
    def _init():
        sum_ref[...] = jnp.zeros_like(sum_ref)
        max_ref[...] = jnp.full_like(max_ref, -jnp.inf)

    x = x_ref[0].astype(jnp.float32)                      # (C, block_hw)

    def _accumulate(x_sum, x_max):
        sum_ref[...] += jnp.sum(x_sum, axis=-1, keepdims=True)              # (C, 1)
        max_ref[...] = jnp.maximum(max_ref[...],
                                   jnp.max(x_max, axis=-1, keepdims=True))  # (C, 1)

    if hw % block_hw != 0:
        # Only the final tile overhangs HW; mask it there, run the cheap
        # unmasked path on every other tile.
        last = nk - 1

        @pl.when(k != last)
        def _full_tile():
            _accumulate(x, x)

        @pl.when(k == last)
        def _partial_tile():
            col = jax.lax.broadcasted_iota(jnp.int32, x.shape, 1) + k * block_hw
            valid = col < hw
            _accumulate(jnp.where(valid, x, 0.0), jnp.where(valid, x, -jnp.inf))
    else:
        _accumulate(x, x)

    @pl.when(k == nk - 1)
    def _finalize():
        avg = sum_ref[...] * jnp.float32(1.0 / hw)        # AdaptiveAvgPool2d(1)
        mx = max_ref[...]                                 # AdaptiveMaxPool2d(1)
        pooled = jnp.concatenate([avg, mx], axis=1)       # (C, 2)

        w1 = w1_ref[...].astype(jnp.float32)              # (Cr, C)
        w2 = w2_ref[...].astype(jnp.float32)              # (C, Cr)

        # fc1 -> relu -> fc2 applied to both pooled stats in one pass.
        h = jnp.maximum(
            jnp.dot(w1, pooled, preferred_element_type=jnp.float32), 0.0)   # (Cr, 2)
        y = jnp.dot(w2, h, preferred_element_type=jnp.float32)              # (C, 2)

        out = jax.nn.sigmoid(y[:, 0:1] + y[:, 1:2])       # (C, 1)
        o_ref[0] = out.astype(o_ref.dtype)


def _choose_block_hw(hw, c, itemsize, target_bytes=4 * 1024 * 1024):
    """Largest spatial tile within ~target_bytes that satisfies the TPU lane
    constraint (multiple of 128, or the full extent)."""
    if hw * c * itemsize <= target_bytes:
        return hw
    blk = (target_bytes // (c * itemsize)) // 128 * 128
    return int(max(128, min(blk, hw)))


def channel_attention(x_nchw, w1, w2, *, block_hw=None):
    """x_nchw: (N, C, H, W); w1: (C//8, C, 1, 1); w2: (C, C//8, 1, 1).

    Returns (N, C, 1, 1) attention weights, matching the PyTorch module."""
    N, C, H, W = x_nchw.shape
    Cr = w1.shape[0]
    HW = H * W

    # Free layout plumbing: NCHW -> (N, C, HW); 1x1 conv weights -> matmuls.
    x = x_nchw.reshape(N, C, HW)
    w1m = w1.reshape(Cr, C)
    w2m = w2.reshape(C, Cr)

    if block_hw is None:
        block_hw = _choose_block_hw(HW, C, jnp.dtype(x.dtype).itemsize)
    nk = pl.cdiv(HW, block_hw)

    kernel = functools.partial(_channel_attention_kernel, hw=HW, block_hw=block_hw)

    out_itemsize = jnp.dtype(x_nchw.dtype).itemsize
    bytes_accessed = int(x.size * jnp.dtype(x.dtype).itemsize
                         + w1m.size * jnp.dtype(w1m.dtype).itemsize
                         + w2m.size * jnp.dtype(w2m.dtype).itemsize
                         + N * C * out_itemsize)

    out = pl.pallas_call(
        kernel,
        out_shape=jax.ShapeDtypeStruct((N, C, 1), x_nchw.dtype),
        grid_spec=pltpu.PrefetchScalarGridSpec(
            num_scalar_prefetch=0,
            grid=(N, nk),
            in_specs=[
                pl.BlockSpec((1, C, block_hw), lambda n, k: (n, 0, k)),
                pl.BlockSpec((Cr, C), lambda n, k: (0, 0)),
                pl.BlockSpec((C, Cr), lambda n, k: (0, 0)),
            ],
            out_specs=pl.BlockSpec((1, C, 1), lambda n, k: (n, 0, 0)),
            scratch_shapes=[
                pltpu.VMEM((C, 1), jnp.float32),   # running sum
                pltpu.VMEM((C, 1), jnp.float32),   # running max
            ],
        ),
        compiler_params=pltpu.CompilerParams(
            dimension_semantics=("parallel", "arbitrary"),
            vmem_limit_bytes=32 * 1024 * 1024,
        ),
        cost_estimate=pl.CostEstimate(
            flops=2 * N * HW * C + 8 * N * C * Cr,
            transcendentals=N * C,
            bytes_accessed=bytes_accessed,
        ),
    )(x, w1m, w2m)

    return out.reshape(N, C, 1, 1)


def channel_attention_ref(x_nchw, w1, w2):
    """Pure-JAX reference mirroring the PyTorch forward (f32 math)."""
    N, C, H, W = x_nchw.shape
    Cr = w1.shape[0]
    xf = x_nchw.astype(jnp.float32)
    avg = jnp.mean(xf, axis=(2, 3))                       # (N, C)
    mx = jnp.max(xf, axis=(2, 3))                         # (N, C)
    W1 = w1.reshape(Cr, C).astype(jnp.float32)
    W2 = w2.reshape(C, Cr).astype(jnp.float32)

    def mlp(v):
        return jnp.maximum(v @ W1.T, 0.0) @ W2.T

    out = jax.nn.sigmoid(mlp(avg) + mlp(mx))              # (N, C)
    return out.reshape(N, C, 1, 1)


if __name__ == "__main__":
    key = jax.random.PRNGKey(0)
    kx, k1, k2, kx2 = jax.random.split(key, 4)

    # in_planes must be divisible by 8 (Cr = C // 8 >= 1).
    N, C, H, W = 2, 16, 16, 16
    Cr = C // 8
    x = jax.random.normal(kx, (N, C, H, W), dtype=jnp.float32)
    w1 = jax.random.normal(k1, (Cr, C, 1, 1), dtype=jnp.float32) * 0.1  # fc1 weight
    w2 = jax.random.normal(k2, (C, Cr, 1, 1), dtype=jnp.float32) * 0.1  # fc2 weight

    # Case 1: f32, single spatial tile per batch element.
    out = jax.block_until_ready(channel_attention(x, w1, w2))
    ref = channel_attention_ref(x, w1, w2)
    assert out.shape == (N, C, 1, 1)
    assert jnp.allclose(out, ref, atol=1e-5, rtol=1e-5), "f32 mismatch vs reference"

    # Case 2: bf16 activations streamed in native dtype, spatial tiling forced
    # (HW = 320 with 128-wide tiles -> exercises masked partial-tile path).
    H2, W2_ = 16, 20
    x2 = jax.random.normal(kx2, (N, C, H2, W2_), dtype=jnp.bfloat16)
    out2 = jax.block_until_ready(channel_attention(x2, w1, w2, block_hw=128))
    ref2 = channel_attention_ref(x2, w1, w2)
    assert out2.shape == (N, C, 1, 1)
    assert jnp.allclose(out2.astype(jnp.float32), ref2, atol=1e-2, rtol=1e-2), \
        "bf16/tiled mismatch vs reference"

    print("KERNEL_OK")
</pallas_src>

<mosaic_0001>
module attributes {stable_mosaic.version = 11 : i64} {
  func.func @_channel_attention_kernel(%arg0: i32, %arg1: i32, %arg2: memref<1x16x256xf32, #tpu.memory_space<vmem>>, %arg3: memref<2x16xf32, #tpu.memory_space<vmem>>, %arg4: memref<16x2xf32, #tpu.memory_space<vmem>>, %arg5: memref<1x16x1xf32, #tpu.memory_space<vmem>>, %arg6: memref<16x1xf32, #tpu.memory_space<vmem>>, %arg7: memref<16x1xf32, #tpu.memory_space<vmem>>) attributes {dimension_semantics = [#tpu.dimension_semantics<parallel>, #tpu.dimension_semantics<arbitrary>], iteration_bounds = array<i64: 2, 1>, scalar_prefetch = 0 : i64, scratch_operands = 2 : i64, tpu.core_type = #tpu.core_type<tc>, window_params = [{transform_indices = @transform_0, window_bounds = array<i64: 1, 16, 256>}, {pipeline_mode = #tpu.pipeline_mode<synchronous>, transform_indices = @transform_1, window_bounds = array<i64: 2, 16>}, {pipeline_mode = #tpu.pipeline_mode<synchronous>, transform_indices = @transform_2, window_bounds = array<i64: 16, 2>}, {transform_indices = @transform_3, window_bounds = array<i64: 1, 16, 1>}]} {
    %c0_i32 = arith.constant 0 : i32
    %0 = arith.cmpi eq, %arg1, %c0_i32 : i32
    %1 = arith.extui %0 : i1 to i32
    %c0_i32_0 = arith.constant 0 : i32
    %2 = arith.cmpi ne, %1, %c0_i32_0 : i32
    scf.if %2 {
      %cst_14 = arith.constant 0.000000e+00 : f32
      %18 = vector.broadcast %cst_14 : f32 to vector<16x1xf32>
      %c0_15 = arith.constant 0 : index
      %c0_16 = arith.constant 0 : index
      %19 = vector.load %arg6[%c0_15, %c0_16] : memref<16x1xf32, #tpu.memory_space<vmem>>, vector<16x1xf32>
      tpu.vector_store %arg6[%c0_15, %c0_16], %18 {strides = array<i32>} : memref<16x1xf32, #tpu.memory_space<vmem>>, vector<16x1xf32>,
      %cst_17 = arith.constant 0xFF800000 : f32
      %20 = vector.broadcast %cst_17 : f32 to vector<16x1xf32>
      %c0_18 = arith.constant 0 : index
      %c0_19 = arith.constant 0 : index
      %21 = vector.load %arg7[%c0_18, %c0_19] : memref<16x1xf32, #tpu.memory_space<vmem>>, vector<16x1xf32>
      tpu.vector_store %arg7[%c0_18, %c0_19], %20 {strides = array<i32>} : memref<16x1xf32, #tpu.memory_space<vmem>>, vector<16x1xf32>,
    } else {
    }
    %c0 = arith.constant 0 : index
    %c0_1 = arith.constant 0 : index
    %c0_2 = arith.constant 0 : index
    %3 = vector.load %arg2[%c0, %c0_1, %c0_2] : memref<1x16x256xf32, #tpu.memory_space<vmem>>, vector<1x16x256xf32>
    %4 = vector.shape_cast %3 : vector<1x16x256xf32> to vector<16x256xf32>
    %c0_3 = arith.constant 0 : index
    %c0_4 = arith.constant 0 : index
    %5 = vector.load %arg6[%c0_3, %c0_4] : memref<16x1xf32, #tpu.memory_space<vmem>>, vector<16x1xf32>
    %cst = arith.constant dense<0.000000e+00> : vector<16xf32>
    %6 = vector.multi_reduction <add>, %4, %cst [1] : vector<16x256xf32> to vector<16xf32>
    %7 = vector.shape_cast %6 : vector<16xf32> to vector<16x1xf32>
    %8 = arith.addf %5, %7 : vector<16x1xf32>
    %c0_5 = arith.constant 0 : index
    %c0_6 = arith.constant 0 : index
    %9 = vector.load %arg6[%c0_5, %c0_6] : memref<16x1xf32, #tpu.memory_space<vmem>>, vector<16x1xf32>
    tpu.vector_store %arg6[%c0_5, %c0_6], %8 {strides = array<i32>} : memref<16x1xf32, #tpu.memory_space<vmem>>, vector<16x1xf32>,
    %c0_7 = arith.constant 0 : index
    %c0_8 = arith.constant 0 : index
    %10 = vector.load %arg7[%c0_7, %c0_8] : memref<16x1xf32, #tpu.memory_space<vmem>>, vector<16x1xf32>
    %cst_9 = arith.constant dense<0xFF800000> : vector<16xf32>
    %11 = vector.multi_reduction <maximumf>, %4, %cst_9 [1] : vector<16x256xf32> to vector<16xf32>
    %12 = vector.shape_cast %11 : vector<16xf32> to vector<16x1xf32>
    %13 = arith.maximumf %10, %12 : vector<16x1xf32>
    %c0_10 = arith.constant 0 : index
    %c0_11 = arith.constant 0 : index
    %14 = vector.load %arg7[%c0_10, %c0_11] : memref<16x1xf32, #tpu.memory_space<vmem>>, vector<16x1xf32>
    tpu.vector_store %arg7[%c0_10, %c0_11], %13 {strides = array<i32>} : memref<16x1xf32, #tpu.memory_space<vmem>>, vector<16x1xf32>,
    %c0_i32_12 = arith.constant 0 : i32
    %15 = arith.cmpi eq, %arg1, %c0_i32_12 : i32
    %16 = arith.extui %15 : i1 to i32
    %c0_i32_13 = arith.constant 0 : i32
    %17 = arith.cmpi ne, %16, %c0_i32_13 : i32
    scf.if %17 {
      %c0_14 = arith.constant 0 : index
      %c0_15 = arith.constant 0 : index
      %18 = vector.load %arg6[%c0_14, %c0_15] : memref<16x1xf32, #tpu.memory_space<vmem>>, vector<16x1xf32>
      %cst_16 = arith.constant 3.906250e-03 : f32
      %19 = vector.broadcast %cst_16 : f32 to vector<16x1xf32>
      %20 = arith.mulf %18, %19 : vector<16x1xf32>
      %c0_17 = arith.constant 0 : index
      %c0_18 = arith.constant 0 : index
      %21 = vector.load %arg7[%c0_17, %c0_18] : memref<16x1xf32, #tpu.memory_space<vmem>>, vector<16x1xf32>
      %22 = tpu.concatenate %20, %21 in 1 : vector<16x1xf32>, vector<16x1xf32> -> vector<16x2xf32>
      %c0_19 = arith.constant 0 : index
      %c0_20 = arith.constant 0 : index
      %23 = vector.load %arg3[%c0_19, %c0_20] : memref<2x16xf32, #tpu.memory_space<vmem>>, vector<2x16xf32>
      %c0_21 = arith.constant 0 : index
      %c0_22 = arith.constant 0 : index
      %24 = vector.load %arg4[%c0_21, %c0_22] : memref<16x2xf32, #tpu.memory_space<vmem>>, vector<16x2xf32>
      %cst_23 = arith.constant dense<0.000000e+00> : vector<2x2xf32>
      %25 = tpu.matmul %23, %22, %cst_23 {dimension_numbers = #tpu.dot_dimension_numbers<[1], [0], [0], [1], [0, 0, 1, 1], [], []>} : vector<2x16xf32>, vector<16x2xf32>, vector<2x2xf32> -> vector<2x2xf32>
      %cst_24 = arith.constant 0.000000e+00 : f32
      %26 = vector.broadcast %cst_24 : f32 to vector<2x2xf32>
      %27 = arith.maximumf %25, %26 : vector<2x2xf32>
      %cst_25 = arith.constant dense<0.000000e+00> : vector<16x2xf32>
      %28 = tpu.matmul %24, %27, %cst_25 {dimension_numbers = #tpu.dot_dimension_numbers<[1], [0], [0], [1], [0, 0, 1, 1], [], []>} : vector<16x2xf32>, vector<2x2xf32>, vector<16x2xf32> -> vector<16x2xf32>
      %29 = vector.extract_strided_slice %28 {offsets = [0, 0], sizes = [16, 1], strides = [1, 1]} : vector<16x2xf32> to vector<16x1xf32>
      %30 = vector.extract_strided_slice %28 {offsets = [0, 1], sizes = [16, 1], strides = [1, 1]} : vector<16x2xf32> to vector<16x1xf32>
      %31 = arith.addf %29, %30 : vector<16x1xf32>
      %32 = arith.negf %31 : vector<16x1xf32>
      %33 = math.exp %32 : vector<16x1xf32>
      %cst_26 = arith.constant 1.000000e+00 : f32
      %34 = vector.broadcast %cst_26 : f32 to vector<16x1xf32>
      %35 = arith.addf %34, %33 : vector<16x1xf32>
      %36 = arith.divf %34, %35 : vector<16x1xf32>
      %c0_27 = arith.constant 0 : index
      %c0_28 = arith.constant 0 : index
      %c0_29 = arith.constant 0 : index
      %37 = vector.load %arg5[%c0_27, %c0_28, %c0_29] : memref<1x16x1xf32, #tpu.memory_space<vmem>>, vector<1x16x1xf32>
      %38 = vector.shape_cast %37 : vector<1x16x1xf32> to vector<16x1xf32>
      %39 = vector.shape_cast %36 : vector<16x1xf32> to vector<1x16x1xf32>
      tpu.vector_store %arg5[%c0_27, %c0_28, %c0_29], %39 {strides = array<i32>} : memref<1x16x1xf32, #tpu.memory_space<vmem>>, vector<1x16x1xf32>,
    } else {
    }
    return
  }
  func.func @transform_0(%arg0: i32, %arg1: i32) -> (i32, i32, i32) {
    %c0_i32 = arith.constant 0 : i32
    %c0_i32_0 = arith.constant 0 : i32
    return %arg0, %c0_i32, %arg1 : i32, i32, i32
  }
  func.func @transform_1(%arg0: i32, %arg1: i32) -> (i32, i32) {
    %c0_i32 = arith.constant 0 : i32
    %c0_i32_0 = arith.constant 0 : i32
    %c0_i32_1 = arith.constant 0 : i32
    return %c0_i32, %c0_i32_0 : i32, i32
  }
  func.func @transform_2(%arg0: i32, %arg1: i32) -> (i32, i32) {
    %c0_i32 = arith.constant 0 : i32
    %c0_i32_0 = arith.constant 0 : i32
    %c0_i32_1 = arith.constant 0 : i32
    return %c0_i32, %c0_i32_0 : i32, i32
  }
  func.func @transform_3(%arg0: i32, %arg1: i32) -> (i32, i32, i32) {
    %c0_i32 = arith.constant 0 : i32
    %c0_i32_0 = arith.constant 0 : i32
    %c0_i32_1 = arith.constant 0 : i32
    return %arg0, %c0_i32, %c0_i32_0 : i32, i32, i32
  }
}

</mosaic_0001>

<llo_original>
// kernel: tpu_custom_call.1
$region0: #{tpu_custom_call.1}
  #allocation0 [shape = 'u32[]', space=smem, size = 0x4, offset = 0x4, fixed_abs, tag = 'smem constant byte address 0x4 - core index']
  #allocation1 [shape = 'u32[144,128]{1,0:T(1,128)}', space=vmem, size = 0x12000, scoped, tag = 'internal scratch']
  #allocation2 [shape = 'f32[16,1]{1,0:T(8,128)}', space=vmem, size = 0x2000, scoped, tag = 'scratch operand']
  #allocation3 [shape = 'f32[16,1]{1,0:T(8,128)}', space=vmem, size = 0x2000, scoped, tag = 'scratch operand']
  %s0 = inlined_call_operand.hbm [shape: f32[2,16,256], index: 0, kind: input, shape index: {}]
  %s1 = inlined_call_operand.vmem [shape: f32[2,16], index: 1, kind: input, shape index: {}]
  %s2 = inlined_call_operand.vmem [shape: f32[16,2], index: 2, kind: input, shape index: {}]
  %s3 = inlined_call_operand.vmem [shape: f32[2,16,1], index: 3, kind: output, shape index: {}]
  %s4 = sld [smem:[#allocation0]]
  $region57: #{tpu_custom_call.1} parent=0
    _
  %s6 = ssub.s32 1, %s4
  %s7 = scalar_select 0, %s6, %s4
  $region1: #{tpu_custom_call.1} parent=0
    #allocation4 [shape = 'u8[32768]{0}', space=vmem, size = 0x8000, scoped, tag = 'input window, operand 0']
    #allocation5 [shape = 's32[2]{0}', space=sflag, size = 0x8, scoped, tag = 'scoped memory for tpu_custom_call.1']
    %8 = vsyncpa [#allocation5], 0
    %s9 = scalar_lea.sflag [#allocation5], 1
    %10 = vsyncpa %s9, 0
    loop: start=0, step=1, limit=4
    $region2: #{tpu_custom_call.1} parent=1 // loop_pre_header
      _
    $region3: #{tpu_custom_call.1} parent=1 // loop_header
      %s12 = sphi 0, %s16
      %p13 = scmp.ge.s32.totalorder %s12, 4
      %s19 = sphi 0, %s31
      %s20 = sphi 0, %s27
      %s21 = sphi 0, %s19
      %s22 = sphi 0, %s20
      %s23 = sphi 0, %s21
      %s24 = sphi 0, %s22
      %s36 = sphi 0, %s38
      %s39 = sphi 0, %s36
      %s40 = sphi 0, %s39
      %s56 = sphi 0, %s40
      %s60 = sphi 0, %s60
      %s62 = sphi 0, %s60
      %s63 = sphi 0, %s62
      %s77 = sphi 0, %s63
      %s81 = sphi 0, %s81
      %s83 = sphi 0, %s81
      %s84 = sphi 0, %s83
      %s98 = sphi 0, %s84
      %s104 = sphi 0, %s106
      %s107 = sphi 0, %s104
      %s108 = sphi 0, %s107
      %s124 = sphi 0, %s108
    $region4: #{tpu_custom_call.1} parent=1 // loop_header_branch
      %15 = sbr.rel (%p13) target = $region8
    $region5: #{tpu_custom_call.1} parent=1 // loop_body
      %s17 = ssub.s32 %s12, 1
      %s18 = ssub.s32 %s12, 2
      %s25 = sadd.s32 1, %s20
      %p26 = scmp.ge.s32.totalorder %s25, 1
      %s27 = scalar_select %p26, 0, %s25
      %s28 = sadd.s32 1, %s19
      %s29 = scalar_select %p26, %s28, %s19
      %p30 = scmp.ge.s32.totalorder %s29, 2
      %s31 = scalar_select %p30, 0, %s29
      %s32 = ssub.s32 %s19, %s31
      %s33 = ssub.s32 %s20, %s27
      %s34 = sor.u32 %s32, %s33
      %p35 = scmp.eq.s32.totalorder %s34, 0
      %s37 = sadd.s32 %s36, 1
      %s38 = scalar_select %p35, %s36, %s37
      %p41 = pneg %p35
      %p42 = scmp.eq.s32.totalorder %s12, 1
      %p43 = por %p41, %p42
      %p44 = scmp.ne.s32.totalorder %s36, %s39
      %p45 = scmp.eq.s32.totalorder %s12, 0
      %p46 = por %p44, %p45
      %p47 = scmp.ne.s32.totalorder %s36, %s39
      %p48 = scmp.eq.s32.totalorder %s17, 1
      %p49 = por %p47, %p48
      %p50 = scmp.ne.s32.totalorder %s39, %s40
      %p51 = scmp.eq.s32.totalorder %s17, 0
      %p52 = por %p50, %p51
      %p53 = scmp.ne.s32.totalorder %s39, %s40
      %p54 = scmp.eq.s32.totalorder %s18, 1
      %p55 = por %p53, %p54
      %p57 = scmp.ne.s32.totalorder %s40, %s56
      %p58 = scmp.eq.s32.totalorder %s18, 0
      %p59 = por %p57, %p58
      %s61 = sadd.s32 %s60, 1
      %p64 = scmp.eq.s32.totalorder %s12, 1
      %p65 = scmp.ne.s32.totalorder %s60, %s62
      %p66 = scmp.eq.s32.totalorder %s12, 0
      %p67 = por %p65, %p66
      %p68 = scmp.ne.s32.totalorder %s60, %s62
      %p69 = scmp.eq.s32.totalorder %s17, 1
      %p70 = por %p68, %p69
      %p71 = scmp.ne.s32.totalorder %s62, %s63
      %p72 = scmp.eq.s32.totalorder %s17, 0
      %p73 = por %p71, %p72
      %p74 = scmp.ne.s32.totalorder %s62, %s63
      %p75 = scmp.eq.s32.totalorder %s18, 1
      %p76 = por %p74, %p75
      %p78 = scmp.ne.s32.totalorder %s63, %s77
      %p79 = scmp.eq.s32.totalorder %s18, 0
      %p80 = por %p78, %p79
      %s82 = sadd.s32 %s81, 1
      %p85 = scmp.eq.s32.totalorder %s12, 1
      %p86 = scmp.ne.s32.totalorder %s81, %s83
      %p87 = scmp.eq.s32.totalorder %s12, 0
      %p88 = por %p86, %p87
      %p89 = scmp.ne.s32.totalorder %s81, %s83
      %p90 = scmp.eq.s32.totalorder %s17, 1
      %p91 = por %p89, %p90
      %p92 = scmp.ne.s32.totalorder %s83, %s84
      %p93 = scmp.eq.s32.totalorder %s17, 0
      %p94 = por %p92, %p93
      %p95 = scmp.ne.s32.totalorder %s83, %s84
      %p96 = scmp.eq.s32.totalorder %s18, 1
      %p97 = por %p95, %p96
      %p99 = scmp.ne.s32.totalorder %s84, %s98
      %p100 = scmp.eq.s32.totalorder %s18, 0
      %p101 = por %p99, %p100
      %s102 = ssub.s32 %s19, %s31
      %p103 = scmp.eq.s32.totalorder %s102, 0
      %s105 = sadd.s32 %s104, 1
      %s106 = scalar_select %p103, %s104, %s105
      %p109 = pneg %p103
      %p110 = scmp.eq.s32.totalorder %s12, 1
      %p111 = por %p109, %p110
      %p112 = scmp.ne.s32.totalorder %s104, %s107
      %p113 = scmp.eq.s32.totalorder %s12, 0
      %p114 = por %p112, %p113
      %p115 = scmp.ne.s32.totalorder %s104, %s107
      %p116 = scmp.eq.s32.totalorder %s17, 1
      %p117 = por %p115, %p116
      %p118 = scmp.ne.s32.totalorder %s107, %s108
      %p119 = scmp.eq.s32.totalorder %s17, 0
      %p120 = por %p118, %p119
      %p121 = scmp.ne.s32.totalorder %s107, %s108
      %p122 = scmp.eq.s32.totalorder %s18, 1
      %p123 = por %p121, %p122
      %p125 = scmp.ne.s32.totalorder %s108, %s124
      %p126 = scmp.eq.s32.totalorder %s18, 0
      %p127 = por %p125, %p126
      %p128 = scmp.le.s32.totalorder 1, %s12
      %p129 = scmp.lt.s32.totalorder %s12, 3
      %p130 = pnand %p128, %p129
      %p131 = pneg %p130
      // Predicated region
      $region9: #{tpu_custom_call.1} parent=5 // pred_check
        _
      $region10: #{tpu_custom_call.1} parent=5 // pred_check_branch
        %133 = sbr.rel (%p130) target = $region12
      $region11: #{tpu_custom_call.1} parent=5 // pred_region
        %s134 = ssub.s32 %s12, 1
        // Predicated region
        $region13: #{tpu_custom_call.1} parent=11 // pred_check
          %p135 = pneg %p73
        $region14: #{tpu_custom_call.1} parent=11 // pred_check_branch
          %137 = sbr.rel (%p135) target = $region16
        $region15: #{tpu_custom_call.1} parent=11 // pred_region
          _
        $region16: #{tpu_custom_call.1} parent=11 // pred_fallthru
          _
        // Predicated region
        $region17: #{tpu_custom_call.1} parent=11 // pred_check
          %p138 = pneg %p94
        $region18: #{tpu_custom_call.1} parent=11 // pred_check_branch
          %140 = sbr.rel (%p138) target = $region20
        $region19: #{tpu_custom_call.1} parent=11 // pred_region
          _
        $region20: #{tpu_custom_call.1} parent=11 // pred_fallthru
          _
      $region12: #{tpu_custom_call.1} parent=5 // pred_fallthru
        _
      %p141 = scmp.lt.s32.totalorder %s12, 2
      // Predicated region
      $region21: #{tpu_custom_call.1} parent=5 // pred_check
        %p142 = pneg %p141
      $region22: #{tpu_custom_call.1} parent=5 // pred_check_branch
        %144 = sbr.rel (%p142) target = $region24
      $region23: #{tpu_custom_call.1} parent=5 // pred_region
        // Predicated region
        $region25: #{tpu_custom_call.1} parent=23 // pred_check
          %p145 = pneg %p46
        $region26: #{tpu_custom_call.1} parent=23 // pred_check_branch
          %147 = sbr.rel (%p145) target = $region28
        $region27: #{tpu_custom_call.1} parent=23 // pred_region
          %s148 = sand.u32 %s36, 1
          %s149 = scalar_lea.sflag [#allocation5], %s148
          %s150 = sand.u32 %s36, 1
          %s151 = smul.addr %s150, 32
          %s152 = scalar_lea.vmem [#allocation4], %s151
          %s153 = smul.u32 2, %s20
          %s155 = ssub.s32 512, 512
          %156 = vsyncadd %s149, %s155
          %s157 = smul.addr %s19, 4
          %s158 = sadd.s32 %s153, %s157
          %s159 = smul.addr %s158, 128
          %s160 = scalar_lea.hbm %s0, %s159
          %s161 = sshll.u32 %s152, 4
          %s162 = int_to_ptr.vmem [resolvable:$true] %s161
          %167 = dma.hbm_to_vmem [thread:$0]  %s160, 512, %s162, %s149, 256, 256, 16
        $region28: #{tpu_custom_call.1} parent=23 // pred_fallthru
          _
      $region24: #{tpu_custom_call.1} parent=5 // pred_fallthru
        _
      %p168 = scmp.le.s32.totalorder 1, %s12
      %p169 = scmp.lt.s32.totalorder %s12, 3
      %p170 = pnand %p168, %p169
      %p171 = pneg %p170
      // Predicated region
      $region29: #{tpu_custom_call.1} parent=5 // pred_check
        _
      $region30: #{tpu_custom_call.1} parent=5 // pred_check_branch
        %173 = sbr.rel (%p170) target = $region32
      $region31: #{tpu_custom_call.1} parent=5 // pred_region
        %s174 = ssub.s32 %s12, 1
        %s175 = sand.u32 %s39, 1
        %s176 = scalar_lea.sflag [#allocation5], %s175
        %s177 = sand.u32 %s39, 1
        %s178 = smul.addr %s177, 32
        %s179 = scalar_lea.vmem [#allocation4], %s178
        // Predicated region
        $region33: #{tpu_custom_call.1} parent=31 // pred_check
          %p180 = pneg %p52
        $region34: #{tpu_custom_call.1} parent=31 // pred_check_branch
          %182 = sbr.rel (%p180) target = $region36
        $region35: #{tpu_custom_call.1} parent=31 // pred_region
          %183 = dma.done %s176, 512
        $region36: #{tpu_custom_call.1} parent=31 // pred_fallthru
          _
        %s184 = sand.u32 %s39, 1
        %s185 = scalar_lea.sflag [#allocation5], %s184
        %s186 = sand.u32 %s39, 1
        %s187 = smul.addr %s186, 32
        %s188 = scalar_lea.vmem [#allocation4], %s187
        %p189 = pneg %p52
        %p190 = pneg %p49
        %p191 = pneg %p73
        %p192 = pneg %p70
        %p193 = pneg %p94
        %p194 = pneg %p91
        %p195 = pneg %p120
        %p196 = pneg %p117
        %p197 = scmp.lt.s32.totalorder %s21, 1
        %s198 = scalar_select %p197, %s21, 1
        %s199 = smul.addr %s198, 2
        %s200 = smul.addr %s199, 8
        %s201 = scalar_lea.vmem %s3, %s200
        %s202 = smul.u32 2, %s22
        %p203 = scmp.lt.s32.totalorder %s21, 1
        %s204 = scalar_select %p203, %s21, 1
        %s205 = smul.addr %s204, 2
        %s206 = smul.addr %s205, 8
        %s207 = scalar_lea.vmem %s3, %s206
        %p208 = scmp.eq.s32.totalorder %s22, 0
        // Predicated region
        $region37: #{tpu_custom_call.1} parent=31 // pred_check
          %p209 = pneg %p208
        $region38: #{tpu_custom_call.1} parent=31 // pred_check_branch
          %211 = sbr.rel (%p209) target = $region40
        $region39: #{tpu_custom_call.1} parent=31 // pred_region
          %vm212 = vcmask 7168
          %213 = vst.msk [vmem:[#allocation2] sm:$0xff] %vm212, 0.0
          %214 = vst.msk [vmem:[#allocation2 + $0x8] sm:$0xff] %vm212, 0.0
          %215 = vst.msk [vmem:[#allocation3] sm:$0xff] %vm212, -inf
          %216 = vst.msk [vmem:[#allocation3 + $0x8] sm:$0xff] %vm212, -inf
        $region40: #{tpu_custom_call.1} parent=31 // pred_fallthru
          _
        %v217 = vld [vmem:[%s179] sm:$0xff]
        %v218 = vld [vmem:[%s179 + $0x8] sm:$0xff]
        %v219 = vld [vmem:[%s179 + $0x10] sm:$0xff]
        %v220 = vld [vmem:[%s179 + $0x18] sm:$0xff]
        %v221 = vld [vmem:[#allocation2] sm:$0xff]
        %v222 = vld [vmem:[#allocation2 + $0x8] sm:$0xff]
        %v223 = vadd.f32 %v217, %v218
        %224 = vadd.xlane.f32.xlu0 %v223
        %v225 = vpop.xlane.xlu0 %224
        %v226 = vadd.f32 %v219, %v220
        %227 = vadd.xlane.f32.xlu0 %v226
        %v228 = vpop.xlane.xlu0 %227
        %v229 = vadd.f32 %v221, %v225
        %v230 = vadd.f32 %v222, %v228
        %vm231 = vcmask 7168
        %232 = vst.msk [vmem:[#allocation2] sm:$0xff] %vm231, %v229
        %233 = vst.msk [vmem:[#allocation2 + $0x8] sm:$0xff] %vm231, %v230
        %v234 = vld [vmem:[#allocation3] sm:$0xff]
        %v235 = vld [vmem:[#allocation3 + $0x8] sm:$0xff]
        %v236 = vmax.f32 %v217, %v218
        %237 = vmax.xlane.f32.xlu0 %v236
        %v238 = vpop.xlane.xlu0 %237
        %v239 = vmax.f32 %v219, %v220
        %240 = vmax.xlane.f32.xlu0 %v239
        %v241 = vpop.xlane.xlu0 %240
        %v242 = vmax.f32 %v234, %v238
        %v243 = vmax.f32 %v235, %v241
        %244 = vst.msk [vmem:[#allocation3] sm:$0xff] %vm231, %v242
        %245 = vst.msk [vmem:[#allocation3 + $0x8] sm:$0xff] %vm231, %v243
        // Predicated region
        $region41: #{tpu_custom_call.1} parent=31 // pred_check
          %p246 = pneg %p208
        $region42: #{tpu_custom_call.1} parent=31 // pred_check_branch
          %248 = sbr.rel (%p246) target = $region44
        $region43: #{tpu_custom_call.1} parent=31 // pred_region
          %v249 = vld [vmem:[#allocation2] sm:$0xff]
          %v250 = vld [vmem:[#allocation2 + $0x8] sm:$0xff]
          %v251 = vmul.f32 %v249, 0.00390625
          %v252 = vmul.f32 %v250, 0.00390625
          %v253 = vld [vmem:[#allocation3] sm:$0xff]
          %v254 = vld [vmem:[#allocation3 + $0x8] sm:$0xff]
          %257 = vrot.lane.b32.xlu0 %v253, 1
          %v258 = vpop.permute.xlu0 %257
          %259 = vrot.lane.b32.xlu0 %v254, 1
          %v260 = vpop.permute.xlu0 %259
          %v263 = vsel %vm231, %v251, %v258
          %v264 = vsel %vm231, %v252, %v260
          %v265 = vld [vmem:[%s1] sm:$0x3]
          %v266 = vld [vmem:[%s2] sm:$0xff]
          %v267 = vld [vmem:[%s2 + $0x8] sm:$0xff]
          %vm268 = vcmask 130048
          %v270 = vsel %vm268, %v265, 0
          %272 = vmatprep.subr.mxu0 0.0
          %273 = vmatpush1.msra.mxu0 %v263
          %274 = vmatprep.subr.mxu0 0.0
          %275 = vmatpush1.msra.mxu0 %v264
          %276 = vmatprep.subr.mxu0 0.0
          %277 = vmatpush1.msra.mxu0 0.0
          %278 = vmatprep.subr.mxu0 0.0
          %279 = vmatpush1.msra.mxu0 0.0
          %280 = vmatprep.subr.mxu0 0.0
          %281 = vmatpush1.msra.mxu0 0.0
          %282 = vmatprep.subr.mxu0 0.0
          %283 = vmatpush1.msra.mxu0 0.0
          %284 = vmatprep.subr.mxu0 0.0
          %285 = vmatpush1.msra.mxu0 0.0
          %286 = vmatprep.subr.mxu0 0.0
          %287 = vmatpush1.msra.mxu0 0.0
          %288 = vmatprep.subr.mxu0 0.0
          %289 = vmatpush1.msra.mxu0 0.0
          %290 = vmatprep.subr.mxu0 0.0
          %291 = vmatpush1.msra.mxu0 0.0
          %292 = vmatprep.subr.mxu0 0.0
          %293 = vmatpush1.msra.mxu0 0.0
          %294 = vmatprep.subr.mxu0 0.0
          %295 = vmatpush1.msra.mxu0 0.0
          %296 = vmatprep.subr.mxu0 0.0
          %297 = vmatpush1.msra.mxu0 0.0
          %298 = vmatprep.subr.mxu0 0.0
          %299 = vmatpush1.msra.mxu0 0.0
          %300 = vmatprep.subr.mxu0 0.0
          %301 = vmatpush1.msra.mxu0 0.0
          %302 = vmatprep.subr.mxu0 0.0
          %303 = vmatpush1.msra.mxu0 0.0
          %304 = vmatprep.subr.mxu0 0.0
          %305 = vmatpush1.msra.mxu0 0.0
          %306 = vmatprep.subr.mxu0 0.0
          %307 = vmatpush1.msra.mxu0 0.0
          %308 = vmatprep.subr.mxu0 0.0
          %309 = vmatpush1.msra.mxu0 0.0
          %310 = vmatprep.subr.mxu0 0.0
          %311 = vmatpush1.msra.mxu0 0.0
          %312 = vmatprep.subr.mxu0 0.0
          %313 = vmatpush1.msra.mxu0 0.0
          %314 = vmatprep.subr.mxu0 0.0
          %315 = vmatpush1.msra.mxu0 0.0
          %316 = vmatprep.subr.mxu0 0.0
          %317 = vmatpush1.msra.mxu0 0.0
          %318 = vmatprep.subr.mxu0 0.0
          %319 = vmatpush1.msra.mxu0 0.0
          %320 = vmatprep.subr.mxu0 0.0
          %321 = vmatpush1.msra.mxu0 0.0
          %322 = vmatprep.subr.mxu0 0.0
          %323 = vmatpush1.msra.mxu0 0.0
          %324 = vmatprep.subr.mxu0 0.0
          %325 = vmatpush1.msra.mxu0 0.0
          %326 = vmatprep.subr.mxu0 0.0
          %327 = vmatpush1.msra.mxu0 0.0
          %328 = vmatprep.subr.mxu0 0.0
          %329 = vmatpush1.msra.mxu0 0.0
          %330 = vmatprep.subr.mxu0 0.0
          %331 = vmatpush1.msra.mxu0 0.0
          %332 = vmatprep.subr.mxu0 0.0
          %333 = vmatpush1.msra.mxu0 0.0
          %334 = vmatprep.subr.mxu0 0.0
          %335 = vmatpush1.msra.mxu0 0.0
          %336 = vmatprep.mubr.f32.mxu0 0.0
          %337 = vmatmul.mubr.f32.gmra.mrb[0].mxu0 %v270
          %v338 = vpop.f32.mrb[0].mxu0
          %v339 = vadd.f32 0.0, %v338
          %v340 = vpop.f32.mrb[0].mxu0
          %341 = vdwg.mxu0
          %v342 = vmax.f32 %v339, 0.0
          %vm343 = vcmask 15360
          %v345 = vsel %vm343, %v266, 0
          %v348 = vsel %vm343, %v267, 0
          %vm350 = vcmask 1041408
          %v352 = vsel %vm350, %v342, 0
          %354 = vmatprep.subr.mxu0 0.0
          %355 = vmatpush1.msra.mxu0 %v352
          %356 = vmatprep.subr.mxu0 0.0
          %357 = vmatpush1.msra.mxu0 0.0
          %358 = vmatprep.subr.mxu0 0.0
          %359 = vmatpush1.msra.mxu0 0.0
          %360 = vmatprep.subr.mxu0 0.0
          %361 = vmatpush1.msra.mxu0 0.0
          %362 = vmatprep.subr.mxu0 0.0
          %363 = vmatpush1.msra.mxu0 0.0
          %364 = vmatprep.subr.mxu0 0.0
          %365 = vmatpush1.msra.mxu0 0.0
          %366 = vmatprep.subr.mxu0 0.0
          %367 = vmatpush1.msra.mxu0 0.0
          %368 = vmatprep.subr.mxu0 0.0
          %369 = vmatpush1.msra.mxu0 0.0
          %370 = vmatprep.subr.mxu0 0.0
          %371 = vmatpush1.msra.mxu0 0.0
          %372 = vmatprep.subr.mxu0 0.0
          %373 = vmatpush1.msra.mxu0 0.0
          %374 = vmatprep.subr.mxu0 0.0
          %375 = vmatpush1.msra.mxu0 0.0
          %376 = vmatprep.subr.mxu0 0.0
          %377 = vmatpush1.msra.mxu0 0.0
          %378 = vmatprep.subr.mxu0 0.0
          %379 = vmatpush1.msra.mxu0 0.0
          %380 = vmatprep.subr.mxu0 0.0
          %381 = vmatpush1.msra.mxu0 0.0
          %382 = vmatprep.subr.mxu0 0.0
          %383 = vmatpush1.msra.mxu0 0.0
          %384 = vmatprep.subr.mxu0 0.0
          %385 = vmatpush1.msra.mxu0 0.0
          %386 = vmatprep.subr.mxu0 0.0
          %387 = vmatpush1.msra.mxu0 0.0
          %388 = vmatprep.subr.mxu0 0.0
          %389 = vmatpush1.msra.mxu0 0.0
          %390 = vmatprep.subr.mxu0 0.0
          %391 = vmatpush1.msra.mxu0 0.0
          %392 = vmatprep.subr.mxu0 0.0
          %393 = vmatpush1.msra.mxu0 0.0
          %394 = vmatprep.subr.mxu0 0.0
          %395 = vmatpush1.msra.mxu0 0.0
          %396 = vmatprep.subr.mxu0 0.0
          %397 = vmatpush1.msra.mxu0 0.0
          %398 = vmatprep.subr.mxu0 0.0
          %399 = vmatpush1.msra.mxu0 0.0
          %400 = vmatprep.subr.mxu0 0.0
          %401 = vmatpush1.msra.mxu0 0.0
          %402 = vmatprep.subr.mxu0 0.0
          %403 = vmatpush1.msra.mxu0 0.0
          %404 = vmatprep.subr.mxu0 0.0
          %405 = vmatpush1.msra.mxu0 0.0
          %406 = vmatprep.subr.mxu0 0.0
          %407 = vmatpush1.msra.mxu0 0.0
          %408 = vmatprep.subr.mxu0 0.0
          %409 = vmatpush1.msra.mxu0 0.0
          %410 = vmatprep.subr.mxu0 0.0
          %411 = vmatpush1.msra.mxu0 0.0
          %412 = vmatprep.subr.mxu0 0.0
          %413 = vmatpush1.msra.mxu0 0.0
          %414 = vmatprep.subr.mxu0 0.0
          %415 = vmatpush1.msra.mxu0 0.0
          %416 = vmatprep.subr.mxu0 0.0
          %417 = vmatpush1.msra.mxu0 0.0
          %418 = vmatprep.mubr.f32.mxu0 0.0
          %419 = vmatmul.mubr.f32.gmra.mrb[0].mxu0 %v345
          %v420 = vpop.f32.mrb[0].mxu0
          %v421 = vadd.f32 0.0, %v420
          %v422 = vpop.f32.mrb[0].mxu0
          %423 = vmatprep.mubr.f32.mxu0 0.0
          %424 = vmatmul.mubr.f32.gmra.mrb[0].mxu0 %v348
          %v425 = vpop.f32.mrb[0].mxu0
          %v426 = vadd.f32 0.0, %v425
          %v427 = vpop.f32.mrb[0].mxu0
          %428 = vdwg.mxu0
          %431 = vrot.lane.b32.xlu0 %v421, 127
          %v432 = vpop.permute.xlu0 %431
          %433 = vrot.lane.b32.xlu0 %v426, 127
          %v434 = vpop.permute.xlu0 %433
          %v437 = vadd.f32 %v421, %v432
          %v438 = vadd.f32 %v426, %v434
          %v439 = vxor.u32 %v437, 2147483648
          %v440 = vxor.u32 %v438, 2147483648
          %v441 = vmul.f32 %v439, 1.442695
          %v442 = vpow.pop %v441
          %v443 = vmul.f32 %v440, 1.442695
          %v444 = vpow.pop %v443
          %v445 = vadd.f32 %v442, 1.0
          %v446 = vadd.f32 %v444, 1.0
          %v447 = vrcp.pop %v445
          %v448 = vmul.f32 1.0, %v447
          %v449 = vrcp.pop %v446
          %v450 = vmul.f32 1.0, %v449
          %451 = vst.msk [vmem:[%s207] sm:$0xff] %vm231, %v448
          %452 = vst.msk [vmem:[%s207 + $0x8] sm:$0xff] %vm231, %v450
        $region44: #{tpu_custom_call.1} parent=31 // pred_fallthru
          _
        %p453 = scmp.lt.s32.totalorder %s21, 1
        %s454 = scalar_select %p453, %s21, 1
        %s455 = smul.addr %s454, 2
        %s456 = smul.addr %s455, 8
        %s457 = scalar_lea.vmem %s3, %s456
        // Predicated region
        $region45: #{tpu_custom_call.1} parent=31 // pred_check
          %p458 = pneg %p117
        $region46: #{tpu_custom_call.1} parent=31 // pred_check_branch
          %460 = sbr.rel (%p458) target = $region48
        $region47: #{tpu_custom_call.1} parent=31 // pred_region
          _
        $region48: #{tpu_custom_call.1} parent=31 // pred_fallthru
          _
      $region32: #{tpu_custom_call.1} parent=5 // pred_fallthru
        _
      %p461 = scmp.le.s32.totalorder 2, %s12
      // Predicated region
      $region49: #{tpu_custom_call.1} parent=5 // pred_check
        %p462 = pneg %p461
      $region50: #{tpu_custom_call.1} parent=5 // pred_check_branch
        %464 = sbr.rel (%p462) target = $region52
      $region51: #{tpu_custom_call.1} parent=5 // pred_region
        %s465 = ssub.s32 %s12, 2
        // Predicated region
        $region53: #{tpu_custom_call.1} parent=51 // pred_check
          %p466 = pneg %p123
        $region54: #{tpu_custom_call.1} parent=51 // pred_check_branch
          %468 = sbr.rel (%p466) target = $region56
        $region55: #{tpu_custom_call.1} parent=51 // pred_region
          %p469 = scmp.lt.s32.totalorder %s23, 1
          %s470 = scalar_select %p469, %s23, 1
          %s471 = smul.addr %s470, 2
          %s472 = smul.addr %s471, 8
          %s473 = scalar_lea.vmem %s3, %s472
        $region56: #{tpu_custom_call.1} parent=51 // pred_fallthru
          _
      $region52: #{tpu_custom_call.1} parent=5 // pred_fallthru
        _
    $region6: #{tpu_custom_call.1} parent=1 // loop_footer
      %s16 = sadd.s32 1, %s12
    $region7: #{tpu_custom_call.1} parent=1 // loop_footer_branch
      %11 = sbr.rel target = $region3
    $region8: #{tpu_custom_call.1} parent=1 // loop_exit
      _
    %474 = vsyncpa [#allocation5], 1
    %s475 = scalar_lea.sflag [#allocation5], 1
    %476 = vsyncpa %s475, 1

</llo_original>
